<compile_context>
chip_gen: v7x
topology: tpu7x:2x2x1
jax: 0.10.0
libtpu: 0.0.40
codegen_flags: <defaults>
</compile_context>

<pallas_src>
import collections
import functools

import jax
import jax.numpy as jnp
from jax.experimental import pallas as pl
from jax.experimental.pallas import tpu as pltpu


def _round_up(v, m):
    return (v + m - 1) // m * m


def _choose_tile(dim, desired, align):
    """Largest multiple of `align` <= desired that evenly divides `dim`.
    `dim` must already be a multiple of `align` (so `align` always works)."""
    t = max(align, (min(desired, dim) // align) * align)
    while dim % t:
        t -= align
    return t


LinearParams = collections.namedtuple(
    "LinearParams", ["w_kn", "bias_row", "out_features", "in_features"])


def prepare_linear_params(weight, bias=None, compute_dtype=None):
    """One-time, parameter-load-time transform (NOT the per-forward hot path).

    weight: (out_features, in_features) PyTorch layout.
    - transposes to (K, N) so the kernel uses the canonical MXU contraction,
    - zero-pads K / N to 128-lane multiples once,
    - optionally casts to a narrower compute dtype (e.g. jnp.bfloat16).
    """
    N, K = weight.shape
    cd = jnp.dtype(compute_dtype) if compute_dtype is not None else weight.dtype
    K_pad, N_pad = _round_up(K, 128), _round_up(N, 128)
    w_kn = jnp.asarray(weight, cd).T                       # (K, N)
    if (K_pad, N_pad) != (K, N):
        w_kn = jnp.pad(w_kn, ((0, K_pad - K), (0, N_pad - N)))
    bias_row = None
    if bias is not None:
        bias_row = jnp.pad(jnp.asarray(bias, cd), (0, N_pad - N)).reshape(1, N_pad)
    return LinearParams(w_kn, bias_row, N, K)


def _linear_kernel(has_bias, acc_is_out, *refs):
    # Refs: x (tm,tk), w (tk,tn), [bias (1,tn)], out (tm,tn), [acc (tm,tn) f32]
    if acc_is_out:
        if has_bias:
            x_ref, w_ref, b_ref, o_ref = refs
        else:
            x_ref, w_ref, o_ref = refs
        acc_ref = o_ref                       # f32 output: accumulate in place
    else:
        if has_bias:
            x_ref, w_ref, b_ref, o_ref, acc_ref = refs
        else:
            x_ref, w_ref, o_ref, acc_ref = refs

    k = pl.program_id(2)

    @pl.when(k == 0)
    def _init():
        if has_bias:
            # Fold bias into the accumulator init: one broadcast per output tile.
            acc_ref[...] = jnp.broadcast_to(
                b_ref[...].astype(jnp.float32), acc_ref.shape)
        else:
            acc_ref[...] = jnp.zeros_like(acc_ref)

    # Canonical (M,K) x (K,N) contraction -> MXU, f32 accumulation.
    acc_ref[...] += jnp.dot(x_ref[...], w_ref[...],
                            preferred_element_type=jnp.float32)

    if not acc_is_out:
        @pl.when(k == pl.num_programs(2) - 1)
        def _store():
            o_ref[...] = acc_ref[...].astype(o_ref.dtype)


def _vmem_limit_bytes():
    try:
        cap = pltpu.get_tpu_info().vmem_capacity_bytes
    except Exception:
        cap = 64 * 1024 * 1024        # conservative: v7x per-TC VMEM
    return int(cap * 0.85)            # ~15% headroom for Mosaic internals


def _vmem_usage(tm, tn, tk, in_sz, out_sz, bufs, acc_is_out, has_bias):
    b = bufs * tm * tk * in_sz        # x tiles
    b += bufs * tk * tn * in_sz       # weight tiles
    b += 2 * tm * tn * out_sz         # output tiles (double-buffered)
    if not acc_is_out:
        b += tm * tn * 4              # f32 accumulator scratch
    if has_bias:
        b += 2 * tn * in_sz
    return b


def linear_forward(x, params, *, tm=512, tn=512, tk=1024):
    """y = x @ W.T + b with x:(B, in_features) -> (B, out_features)."""
    B, K = x.shape
    assert K == params.in_features, "in_features mismatch"
    N = params.out_features
    w_kn, bias_row = params.w_kn, params.bias_row
    K_pad, N_pad = w_kn.shape
    has_bias = bias_row is not None

    cd = w_kn.dtype                    # compute dtype chosen at prepare time
    out_dtype = x.dtype                # PyTorch semantics: out dtype == input dtype
    acc_is_out = jnp.dtype(out_dtype) == jnp.dtype(jnp.float32)

    # Per-call padding only for the activation, only to (8, 128) minimums.
    M_pad = _round_up(B, 8)
    x = x.astype(cd)
    if (M_pad, K_pad) != (B, K):
        x = jnp.pad(x, ((0, M_pad - B), (0, K_pad - K)))

    in_sz = jnp.dtype(cd).itemsize
    out_sz = jnp.dtype(out_dtype).itemsize

    vmem_limit = _vmem_limit_bytes()
    usable = int(vmem_limit * 0.9)

    # Pick tiles as divisors of the padded dims; shrink if the buffered
    # working set would not fit the (generation-dependent) VMEM budget.
    want_tm, want_tn, want_tk = tm, tn, tk
    while True:
        _tm = _choose_tile(M_pad, want_tm, 8)
        _tn = _choose_tile(N_pad, want_tn, 128)
        _tk = _choose_tile(K_pad, want_tk, 128)
        # v7x has 2 TensorCores: for single-M-block shapes make sure the N
        # axis has >=2 blocks so both cores get work.
        if M_pad // _tm == 1 and N_pad // _tn < 2 and N_pad >= 256:
            _tn = _choose_tile(N_pad, max(N_pad // 2, 128), 128)
        k_steps = K_pad // _tk
        bufs = 3 if k_steps >= 3 else 2
        if _vmem_usage(_tm, _tn, _tk, in_sz, out_sz, bufs,
                       acc_is_out, has_bias) <= usable:
            break
        if want_tk > 128:
            want_tk = max(128, want_tk // 2)
        elif want_tn > 128:
            want_tn = max(128, want_tn // 2)
        elif want_tm > 8:
            want_tm = max(8, want_tm // 2)
        else:
            break                      # minimal tiles; nothing left to shrink
    tm, tn, tk = _tm, _tn, _tk

    grid = (M_pad // tm, N_pad // tn, K_pad // tk)

    def _stream_spec(shape, index_map):
        # Triple-buffer the streamed operands when K is long enough to benefit.
        if grid[2] >= 3:
            return pl.BlockSpec(shape, index_map, pipeline_mode=pl.Buffered(3))
        return pl.BlockSpec(shape, index_map)

    in_specs = [
        _stream_spec((tm, tk), lambda i, j, k: (i, k)),    # x
        _stream_spec((tk, tn), lambda i, j, k: (k, j)),    # weight (K, N)
    ]
    operands = [x, w_kn]
    if has_bias:
        in_specs.append(pl.BlockSpec((1, tn), lambda i, j, k: (0, j)))
        operands.append(bias_row)

    scratch_shapes = [] if acc_is_out else [pltpu.VMEM((tm, tn), jnp.float32)]

    # HBM traffic as actually re-streamed across the grid.
    bytes_accessed = (M_pad * K_pad * in_sz * (N_pad // tn)
                      + K_pad * N_pad * in_sz * (M_pad // tm)
                      + (N_pad * in_sz * (M_pad // tm) if has_bias else 0)
                      + M_pad * N_pad * out_sz)

    out = pl.pallas_call(
        functools.partial(_linear_kernel, has_bias, acc_is_out),
        out_shape=jax.ShapeDtypeStruct((M_pad, N_pad), out_dtype),
        grid_spec=pltpu.PrefetchScalarGridSpec(
            num_scalar_prefetch=0,
            grid=grid,
            in_specs=in_specs,
            out_specs=pl.BlockSpec((tm, tn), lambda i, j, k: (i, j)),
            scratch_shapes=scratch_shapes,
        ),
        compiler_params=pltpu.CompilerParams(
            dimension_semantics=("parallel", "parallel", "arbitrary"),
            vmem_limit_bytes=vmem_limit),
        cost_estimate=pl.CostEstimate(
            flops=2 * M_pad * N_pad * K_pad,
            transcendentals=0,
            bytes_accessed=bytes_accessed),
    )(*operands)

    if (M_pad, N_pad) != (B, N):
        out = out[:B, :N]
    return out


if __name__ == "__main__":
    # Small shapes consistent with a Linear layer: batch=8, in=32, out=64
    B, IN_FEATURES, OUT_FEATURES = 8, 32, 64

    key = jax.random.PRNGKey(0)
    kx, kw, kb = jax.random.split(key, 3)

    x = jax.random.normal(kx, (B, IN_FEATURES), dtype=jnp.float32)
    # Deterministic param init mirroring weight.data.uniform_(-0.1, 0.1)
    weight = jax.random.uniform(kw, (OUT_FEATURES, IN_FEATURES),
                                dtype=jnp.float32, minval=-0.1, maxval=0.1)
    bias = jax.random.uniform(kb, (OUT_FEATURES,),
                              dtype=jnp.float32, minval=-0.1, maxval=0.1)

    # Parameter-load-time transform (transpose/pad once), then the hot path.
    # For bf16 compute: prepare_linear_params(weight, bias, compute_dtype=jnp.bfloat16)
    params = prepare_linear_params(weight, bias)
    y = linear_forward(x, params)
    y = jax.block_until_ready(y)

    y_ref = x @ weight.T + bias[None, :]
    assert y.shape == (B, OUT_FEATURES)
    assert jnp.allclose(y, y_ref, atol=1e-5, rtol=1e-5)

    # Also exercise the bias=None kernel variant (LinearModule(bias=False)).
    params_nb = prepare_linear_params(weight, None)
    y_nb = jax.block_until_ready(linear_forward(x, params_nb))
    assert jnp.allclose(y_nb, x @ weight.T, atol=1e-5, rtol=1e-5)

    # TODO(synk): backward pass (LinearFunction.backward) not implemented;
    # only the forward is translated.
    print("KERNEL_OK")
</pallas_src>

<mosaic_0001>
module attributes {stable_mosaic.version = 11 : i64} {
  func.func @_linear_kernel(%arg0: i32, %arg1: i32, %arg2: i32, %arg3: memref<8x128xf32, #tpu.memory_space<vmem>>, %arg4: memref<128x128xf32, #tpu.memory_space<vmem>>, %arg5: memref<1x128xf32, #tpu.memory_space<vmem>>, %arg6: memref<8x128xf32, #tpu.memory_space<vmem>>) attributes {dimension_semantics = [#tpu.dimension_semantics<parallel>, #tpu.dimension_semantics<parallel>, #tpu.dimension_semantics<arbitrary>], iteration_bounds = array<i64: 1, 1, 1>, scalar_prefetch = 0 : i64, scratch_operands = 0 : i64, tpu.core_type = #tpu.core_type<tc>, window_params = [{transform_indices = @transform_0, window_bounds = array<i64: 8, 128>}, {transform_indices = @transform_1, window_bounds = array<i64: 128, 128>}, {transform_indices = @transform_2, window_bounds = array<i64: 1, 128>}, {transform_indices = @transform_3, window_bounds = array<i64: 8, 128>}]} {
    %c0_i32 = arith.constant 0 : i32
    %0 = arith.cmpi eq, %arg2, %c0_i32 : i32
    %1 = arith.extui %0 : i1 to i32
    %c0_i32_0 = arith.constant 0 : i32
    %2 = arith.cmpi ne, %1, %c0_i32_0 : i32
    scf.if %2 {
      %c0_8 = arith.constant 0 : index
      %c0_9 = arith.constant 0 : index
      %9 = vector.load %arg5[%c0_8, %c0_9] : memref<1x128xf32, #tpu.memory_space<vmem>>, vector<1x128xf32>
      %10 = vector.shape_cast %9 : vector<1x128xf32> to vector<1x128xf32>
      %11 = vector.broadcast %10 : vector<1x128xf32> to vector<8x128xf32>
      %c0_10 = arith.constant 0 : index
      %c0_11 = arith.constant 0 : index
      %12 = vector.load %arg6[%c0_10, %c0_11] : memref<8x128xf32, #tpu.memory_space<vmem>>, vector<8x128xf32>
      tpu.vector_store %arg6[%c0_10, %c0_11], %11 {strides = array<i32>} : memref<8x128xf32, #tpu.memory_space<vmem>>, vector<8x128xf32>,
    } else {
    }
    %c0 = arith.constant 0 : index
    %c0_1 = arith.constant 0 : index
    %3 = vector.load %arg6[%c0, %c0_1] : memref<8x128xf32, #tpu.memory_space<vmem>>, vector<8x128xf32>
    %c0_2 = arith.constant 0 : index
    %c0_3 = arith.constant 0 : index
    %4 = vector.load %arg3[%c0_2, %c0_3] : memref<8x128xf32, #tpu.memory_space<vmem>>, vector<8x128xf32>
    %c0_4 = arith.constant 0 : index
    %c0_5 = arith.constant 0 : index
    %5 = vector.load %arg4[%c0_4, %c0_5] : memref<128x128xf32, #tpu.memory_space<vmem>>, vector<128x128xf32>
    %cst = arith.constant dense<0.000000e+00> : vector<8x128xf32>
    %6 = tpu.matmul %4, %5, %cst {dimension_numbers = #tpu.dot_dimension_numbers<[1], [0], [0], [1], [0, 0, 1, 1], [], []>} : vector<8x128xf32>, vector<128x128xf32>, vector<8x128xf32> -> vector<8x128xf32>
    %7 = arith.addf %3, %6 : vector<8x128xf32>
    %c0_6 = arith.constant 0 : index
    %c0_7 = arith.constant 0 : index
    %8 = vector.load %arg6[%c0_6, %c0_7] : memref<8x128xf32, #tpu.memory_space<vmem>>, vector<8x128xf32>
    tpu.vector_store %arg6[%c0_6, %c0_7], %7 {strides = array<i32>} : memref<8x128xf32, #tpu.memory_space<vmem>>, vector<8x128xf32>,
    return
  }
  func.func @transform_0(%arg0: i32, %arg1: i32, %arg2: i32) -> (i32, i32) {
    %c0_i32 = arith.constant 0 : i32
    return %arg0, %arg2 : i32, i32
  }
  func.func @transform_1(%arg0: i32, %arg1: i32, %arg2: i32) -> (i32, i32) {
    %c0_i32 = arith.constant 0 : i32
    return %arg2, %arg1 : i32, i32
  }
  func.func @transform_2(%arg0: i32, %arg1: i32, %arg2: i32) -> (i32, i32) {
    %c0_i32 = arith.constant 0 : i32
    %c0_i32_0 = arith.constant 0 : i32
    return %c0_i32, %arg1 : i32, i32
  }
  func.func @transform_3(%arg0: i32, %arg1: i32, %arg2: i32) -> (i32, i32) {
    %c0_i32 = arith.constant 0 : i32
    return %arg0, %arg1 : i32, i32
  }
}

</mosaic_0001>

<llo_original>
// kernel: tpu_custom_call.1
$region0: #{tpu_custom_call.1}
  #allocation0 [shape = 'u32[]', space=smem, size = 0x4, offset = 0x4, fixed_abs, tag = 'smem constant byte address 0x4 - core index']
  #allocation1 [shape = 'u32[144,128]{1,0:T(1,128)}', space=vmem, size = 0x12000, scoped, tag = 'internal scratch']
  %s0 = inlined_call_operand.hbm [shape: f32[8,128], index: 0, kind: input, shape index: {}]
  %s1 = inlined_call_operand.hbm [shape: f32[128,128], index: 1, kind: input, shape index: {}]
  %s2 = inlined_call_operand.vmem [shape: f32[1,128], index: 2, kind: input, shape index: {}]
  %s3 = inlined_call_operand.hbm [shape: f32[8,128], index: 3, kind: output, shape index: {}]
  %s4 = sld [smem:[#allocation0]]
  $region34: #{tpu_custom_call.1} parent=0
    _
  %s6 = ssub.s32 1, %s4
  %s7 = scalar_select 0, %s6, %s4
  $region1: #{tpu_custom_call.1} parent=0
    #allocation2 [shape = 'u8[4096]{0}', space=vmem, size = 0x1000, scoped, tag = 'input window, operand 0, single buffered']
    #allocation3 [shape = 's32[1]{0}', space=sflag, size = 0x4, scoped, tag = 'scoped memory for tpu_custom_call.1']
    #allocation4 [shape = 's32[1]{0}', space=sflag, size = 0x4, scoped, tag = 'scoped memory for tpu_custom_call.1']
    #allocation5 [shape = 'u8[65536]{0}', space=vmem, size = 0x10000, scoped, tag = 'input window, operand 1, single buffered']
    #allocation6 [shape = 's32[1]{0}', space=sflag, size = 0x4, scoped, tag = 'scoped memory for tpu_custom_call.1']
    #allocation7 [shape = 'u8[4096]{0}', space=vmem, size = 0x1000, scoped, tag = 'output window, operand 0, single buffered']
    %8 = vsyncpa [#allocation3], 0
    %9 = vsyncpa [#allocation6], 0
    %10 = vsyncpa [#allocation4], 0
    // Predicated region
    $region2: #{tpu_custom_call.1} parent=1 // pred_check
      _
    $region3: #{tpu_custom_call.1} parent=1 // pred_check_branch
      %12 = sbr.rel (0) target = $region5
    $region4: #{tpu_custom_call.1} parent=1 // pred_region
      %s14 = ssub.s32 128, 128
      %15 = vsyncadd [#allocation3], %s14
      %s17 = sshll.u32 [#allocation2], 4
      %s18 = int_to_ptr.vmem [resolvable:$true] %s17
      %20 = dma.hbm_to_vmem [thread:$0]  %s0, 128, %s18, [#allocation3]
    $region5: #{tpu_custom_call.1} parent=1 // pred_fallthru
      _
    // Predicated region
    $region6: #{tpu_custom_call.1} parent=1 // pred_check
      _
    $region7: #{tpu_custom_call.1} parent=1 // pred_check_branch
      %22 = sbr.rel (0) target = $region9
    $region8: #{tpu_custom_call.1} parent=1 // pred_region
      %s24 = ssub.s32 2048, 2048
      %25 = vsyncadd [#allocation6], %s24
      %s26 = sshll.u32 [#allocation5], 4
      %s27 = int_to_ptr.vmem [resolvable:$true] %s26
      %32 = dma.hbm_to_vmem [thread:$0]  %s1, 2048, %s27, [#allocation6], 128, 128, 8
    $region9: #{tpu_custom_call.1} parent=1 // pred_fallthru
      _
    // Predicated region
    $region10: #{tpu_custom_call.1} parent=1 // pred_check
      _
    $region11: #{tpu_custom_call.1} parent=1 // pred_check_branch
      %34 = sbr.rel (0) target = $region13
    $region12: #{tpu_custom_call.1} parent=1 // pred_region
      _
    $region13: #{tpu_custom_call.1} parent=1 // pred_fallthru
      _
    // Predicated region
    $region14: #{tpu_custom_call.1} parent=1 // pred_check
      _
    $region15: #{tpu_custom_call.1} parent=1 // pred_check_branch
      %36 = sbr.rel (0) target = $region17
    $region16: #{tpu_custom_call.1} parent=1 // pred_region
      %37 = dma.done [#allocation3], 128
    $region17: #{tpu_custom_call.1} parent=1 // pred_fallthru
      _
    // Predicated region
    $region18: #{tpu_custom_call.1} parent=1 // pred_check
      _
    $region19: #{tpu_custom_call.1} parent=1 // pred_check_branch
      %39 = sbr.rel (0) target = $region21
    $region20: #{tpu_custom_call.1} parent=1 // pred_region
      %40 = dma.done [#allocation6], 2048
    $region21: #{tpu_custom_call.1} parent=1 // pred_fallthru
      _
    %p41 = scmp.eq.s32.totalorder 0, 0
    // Predicated region
    $region22: #{tpu_custom_call.1} parent=1 // pred_check
      %p42 = pneg %p41
    $region23: #{tpu_custom_call.1} parent=1 // pred_check_branch
      %44 = sbr.rel (%p42) target = $region25
    $region24: #{tpu_custom_call.1} parent=1 // pred_region
      %v45 = vld [vmem:[%s2] sm:$0x1]
      %v47 = vlaneseq
      %v48 = vshrl.u32 %v47, 7
      %v49 = vsub.s32 0, %v48
      %v50 = vrot.slane %v45, %v49
      %52 = vst [vmem:[#allocation7] sm:$0xff] %v50
    $region25: #{tpu_custom_call.1} parent=1 // pred_fallthru
      _
    %v53 = vld [vmem:[#allocation7] sm:$0xff]
    %v54 = vld [vmem:[#allocation2] sm:$0xff]
    %v55 = vld [vmem:[#allocation5] sm:$0xff]
    %v56 = vld [vmem:[#allocation5 + $0x8] sm:$0xff]
    %v57 = vld [vmem:[#allocation5 + $0x10] sm:$0xff]
    %v58 = vld [vmem:[#allocation5 + $0x18] sm:$0xff]
    %v59 = vld [vmem:[#allocation5 + $0x20] sm:$0xff]
    %v60 = vld [vmem:[#allocation5 + $0x28] sm:$0xff]
    %v61 = vld [vmem:[#allocation5 + $0x30] sm:$0xff]
    %v62 = vld [vmem:[#allocation5 + $0x38] sm:$0xff]
    %v63 = vld [vmem:[#allocation5 + $0x40] sm:$0xff]
    %v64 = vld [vmem:[#allocation5 + $0x48] sm:$0xff]
    %v65 = vld [vmem:[#allocation5 + $0x50] sm:$0xff]
    %v66 = vld [vmem:[#allocation5 + $0x58] sm:$0xff]
    %v67 = vld [vmem:[#allocation5 + $0x60] sm:$0xff]
    %v68 = vld [vmem:[#allocation5 + $0x68] sm:$0xff]
    %v69 = vld [vmem:[#allocation5 + $0x70] sm:$0xff]
    %v70 = vld [vmem:[#allocation5 + $0x78] sm:$0xff]
    %71 = vmatprep.subr.mxu0 0.0
    %72 = vmatpush1.msra.mxu0 %v55
    %73 = vmatprep.subr.mxu0 0.0
    %74 = vmatpush1.msra.mxu0 %v56
    %75 = vmatprep.subr.mxu0 0.0
    %76 = vmatpush1.msra.mxu0 %v57
    %77 = vmatprep.subr.mxu0 0.0
    %78 = vmatpush1.msra.mxu0 %v58
    %79 = vmatprep.subr.mxu0 0.0
    %80 = vmatpush1.msra.mxu0 %v59
    %81 = vmatprep.subr.mxu0 0.0
    %82 = vmatpush1.msra.mxu0 %v60
    %83 = vmatprep.subr.mxu0 0.0
    %84 = vmatpush1.msra.mxu0 %v61
    %85 = vmatprep.subr.mxu0 0.0
    %86 = vmatpush1.msra.mxu0 %v62
    %87 = vmatprep.subr.mxu0 0.0
    %88 = vmatpush1.msra.mxu0 %v63
    %89 = vmatprep.subr.mxu0 0.0
    %90 = vmatpush1.msra.mxu0 %v64
    %91 = vmatprep.subr.mxu0 0.0
    %92 = vmatpush1.msra.mxu0 %v65
    %93 = vmatprep.subr.mxu0 0.0
    %94 = vmatpush1.msra.mxu0 %v66
    %95 = vmatprep.subr.mxu0 0.0
    %96 = vmatpush1.msra.mxu0 %v67
    %97 = vmatprep.subr.mxu0 0.0
    %98 = vmatpush1.msra.mxu0 %v68
    %99 = vmatprep.subr.mxu0 0.0
    %100 = vmatpush1.msra.mxu0 %v69
    %101 = vmatprep.subr.mxu0 0.0
    %102 = vmatpush1.msra.mxu0 %v70
    %103 = vmatprep.subr.mxu0 0.0
    %104 = vmatpush1.msra.mxu0 0.0
    %105 = vmatprep.subr.mxu0 0.0
    %106 = vmatpush1.msra.mxu0 0.0
    %107 = vmatprep.subr.mxu0 0.0
    %108 = vmatpush1.msra.mxu0 0.0
    %109 = vmatprep.subr.mxu0 0.0
    %110 = vmatpush1.msra.mxu0 0.0
    %111 = vmatprep.subr.mxu0 0.0
    %112 = vmatpush1.msra.mxu0 0.0
    %113 = vmatprep.subr.mxu0 0.0
    %114 = vmatpush1.msra.mxu0 0.0
    %115 = vmatprep.subr.mxu0 0.0
    %116 = vmatpush1.msra.mxu0 0.0
    %117 = vmatprep.subr.mxu0 0.0
    %118 = vmatpush1.msra.mxu0 0.0
    %119 = vmatprep.subr.mxu0 0.0
    %120 = vmatpush1.msra.mxu0 0.0
    %121 = vmatprep.subr.mxu0 0.0
    %122 = vmatpush1.msra.mxu0 0.0
    %123 = vmatprep.subr.mxu0 0.0
    %124 = vmatpush1.msra.mxu0 0.0
    %125 = vmatprep.subr.mxu0 0.0
    %126 = vmatpush1.msra.mxu0 0.0
    %127 = vmatprep.subr.mxu0 0.0
    %128 = vmatpush1.msra.mxu0 0.0
    %129 = vmatprep.subr.mxu0 0.0
    %130 = vmatpush1.msra.mxu0 0.0
    %131 = vmatprep.subr.mxu0 0.0
    %132 = vmatpush1.msra.mxu0 0.0
    %133 = vmatprep.subr.mxu0 0.0
    %134 = vmatpush1.msra.mxu0 0.0
    %135 = vmatprep.mubr.f32.mxu0 0.0
    %136 = vmatmul.mubr.f32.gmra.mrb[0].mxu0 %v54
    %v137 = vpop.f32.mrb[0].mxu0
    %v138 = vadd.f32 0.0, %v137
    %v139 = vpop.f32.mrb[0].mxu0
    %140 = vdwg.mxu0
    %v141 = vadd.f32 %v53, %v138
    %142 = vst [vmem:[#allocation7] sm:$0xff] %v141
    // Predicated region
    $region26: #{tpu_custom_call.1} parent=1 // pred_check
      _
    $region27: #{tpu_custom_call.1} parent=1 // pred_check_branch
      %144 = sbr.rel (0) target = $region29
    $region28: #{tpu_custom_call.1} parent=1 // pred_region
      %s146 = ssub.s32 128, 128
      %147 = vsyncadd [#allocation4], %s146
      %s149 = sshll.u32 [#allocation7], 4
      %s150 = int_to_ptr.vmem [resolvable:$true] %s149
      %152 = dma.vmem_to_hbm [thread:$0]  %s150, 128, %s3, [#allocation4]
    $region29: #{tpu_custom_call.1} parent=1 // pred_fallthru
      _
    // Predicated region
    $region30: #{tpu_custom_call.1} parent=1 // pred_check
      _
    $region31: #{tpu_custom_call.1} parent=1 // pred_check_branch
      %154 = sbr.rel (0) target = $region33
    $region32: #{tpu_custom_call.1} parent=1 // pred_region
      %155 = dma.done [#allocation4], 128
    $region33: #{tpu_custom_call.1} parent=1 // pred_fallthru
      _
    %156 = vsyncpa [#allocation3], 1
    %157 = vsyncpa [#allocation6], 1
    %158 = vsyncpa [#allocation4], 1

</llo_original>
